<compile_context>
chip_gen: v6e
topology: v6e:2x2x1
jax: 0.10.0
libtpu: 0.0.40
codegen_flags: <defaults>
</compile_context>

<pallas_src>
import jax
import jax.numpy as jnp
from jax.experimental import pallas as pl
from jax.experimental.pallas import tpu as pltpu

_DMA_CHUNK_BYTES = 8 * 1024 * 1024   # target ~8 MiB per DMA descriptor
_MAX_DMA_CHUNKS = 8                  # cap static unroll of the DMA issue loop


def identity(x):
    """Faithful Identity.forward: return the input (aliased, zero copy).

    PyTorch's Identity returns the same tensor object; the fastest and most
    faithful JAX translation is simply returning x — no pallas_call, no HBM
    traffic, no kernel-launch overhead (this also covers the review's
    tiny-input fast path for free).
    """
    return x


def _dma_copy(x, n_chunks, chunk_rows):
    """HBM->HBM copy of `x` into a fresh buffer via chunked async DMAs."""
    rows = x.shape[0]
    itemsize = jnp.dtype(x.dtype).itemsize
    total_bytes = x.size * itemsize

    def kernel(x_hbm, o_hbm, sems):
        # Build one DMA descriptor per chunk (all slices are static).
        copies = []
        for c in range(n_chunks):
            start = c * chunk_rows
            size = min(chunk_rows, rows - start)
            copies.append(
                pltpu.make_async_copy(
                    x_hbm.at[pl.ds(start, size)],
                    o_hbm.at[pl.ds(start, size)],
                    sems.at[c % 2],
                )
            )
        # Issue with at most 2 outstanding DMAs (alternating semaphores);
        # wait on chunk c-2 before reusing its semaphore slot for chunk c.
        for c in range(n_chunks):
            if c >= 2:
                copies[c - 2].wait()
            copies[c].start()
        # Drain the trailing (up to 2) in-flight copies.
        for c in range(max(0, n_chunks - 2), n_chunks):
            copies[c].wait()

    return pl.pallas_call(
        kernel,
        out_shape=jax.ShapeDtypeStruct(x.shape, x.dtype),
        in_specs=[pl.BlockSpec(memory_space=pl.ANY)],   # raw HBM ref, no auto-DMA
        out_specs=pl.BlockSpec(memory_space=pl.ANY),    # raw HBM ref, written by DMA
        scratch_shapes=[pltpu.SemaphoreType.DMA((2,))],
        cost_estimate=pl.CostEstimate(
            flops=0,
            transcendentals=0,
            bytes_accessed=2 * total_bytes,
        ),
    )(x)


def identity_copy(x):
    """Identity that returns a *fresh* buffer equal to x (Pallas DMA copy).

    Use when the caller requires a distinct output buffer; otherwise prefer
    `identity(x)` which is free.
    """
    orig_shape = x.shape
    if x.size == 0:
        return x  # nothing to copy

    # DMA path needs at least one axis to (optionally) chunk along.
    x_nd = x if x.ndim >= 1 else x.reshape(1)
    rows = x_nd.shape[0]
    itemsize = jnp.dtype(x_nd.dtype).itemsize
    total_bytes = x_nd.size * itemsize

    # Number of DMA chunks: ~8 MiB each, at least 1, capped so the static
    # issue loop stays small; a single large contiguous DMA is already at
    # HBM roofline, chunking just overlaps descriptor issue.
    n_chunks = int(max(1, min(rows, _MAX_DMA_CHUNKS,
                              -(-total_bytes // _DMA_CHUNK_BYTES))))
    chunk_rows = -(-rows // n_chunks)        # ceil(rows / n_chunks)
    n_chunks = -(-rows // chunk_rows)        # recompute after rounding

    out = _dma_copy(x_nd, n_chunks, chunk_rows)
    return out.reshape(orig_shape)


if __name__ == "__main__":
    key = jax.random.PRNGKey(0)
    # Small NCHW input consistent with a graph/conv-style model.
    x = jax.random.normal(key, (2, 4, 16, 16), dtype=jnp.float32)

    # Forward pass: faithful Identity semantics (aliased, zero copy).
    y = jax.block_until_ready(identity(x))
    assert y.shape == x.shape
    assert y.dtype == x.dtype
    assert bool(jnp.all(y == x))

    # Fresh-buffer variant: Pallas HBM->HBM DMA copy kernel.
    y_copy = jax.block_until_ready(identity_copy(x))
    assert y_copy.shape == x.shape
    assert y_copy.dtype == x.dtype
    assert bool(jnp.all(y_copy == x))

    # Ragged / non-128-divisible shapes and packed dtypes take the exact same
    # DMA path (no lane/sublane constraints to violate).
    x_odd = jax.random.normal(jax.random.PRNGKey(1), (3, 5, 7), jnp.float32)
    y_odd = jax.block_until_ready(identity_copy(x_odd))
    assert y_odd.shape == x_odd.shape and y_odd.dtype == x_odd.dtype
    assert bool(jnp.all(y_odd == x_odd))

    x_bf16 = jax.random.normal(jax.random.PRNGKey(2), (4, 8, 32)).astype(jnp.bfloat16)
    y_bf16 = jax.block_until_ready(identity_copy(x_bf16))
    assert y_bf16.shape == x_bf16.shape and y_bf16.dtype == x_bf16.dtype
    assert bool(jnp.all(y_bf16 == x_bf16))

    print("KERNEL_OK")
</pallas_src>

<mosaic_0001>
module attributes {stable_mosaic.version = 11 : i64} {
  func.func @kernel(%arg0: memref<2x4x16x16xf32, #tpu.memory_space<any>>, %arg1: memref<2x4x16x16xf32, #tpu.memory_space<any>>, %arg2: memref<2x!tpu.dma_semaphore, #tpu.memory_space<semaphore_mem>>) attributes {dimension_semantics = [], scalar_prefetch = 0 : i64, scratch_operands = 1 : i64, tpu.core_type = #tpu.core_type<tc>} {
    %c0_i32 = arith.constant 0 : i32
    %c0_i32_0 = arith.constant 0 : i32
    %c0_i32_1 = arith.constant 0 : i32
    %c0_i32_2 = arith.constant 0 : i32
    %c0_i32_3 = arith.constant 0 : i32
    %0 = tpu.memref_slice %arg0[%c0_i32_0, %c0_i32_1, %c0_i32_2, %c0_i32_3] : memref<2x4x16x16xf32, #tpu.memory_space<any>> -> memref<2x4x16x16xf32, #tpu.memory_space<any>>
    %c0_i32_4 = arith.constant 0 : i32
    %c0_i32_5 = arith.constant 0 : i32
    %c0_i32_6 = arith.constant 0 : i32
    %c0_i32_7 = arith.constant 0 : i32
    %1 = tpu.memref_slice %arg1[%c0_i32_4, %c0_i32_5, %c0_i32_6, %c0_i32_7] : memref<2x4x16x16xf32, #tpu.memory_space<any>> -> memref<2x4x16x16xf32, #tpu.memory_space<any>>
    %2 = tpu.memref_slice %arg2[%c0_i32] : memref<2x!tpu.dma_semaphore, #tpu.memory_space<semaphore_mem>> -> memref<1x!tpu.dma_semaphore, #tpu.memory_space<semaphore_mem>>
    %3 = tpu.memref_squeeze %2 : memref<1x!tpu.dma_semaphore, #tpu.memory_space<semaphore_mem>> -> memref<!tpu.dma_semaphore, #tpu.memory_space<semaphore_mem>>
    tpu.enqueue_dma source(%0 : memref<2x4x16x16xf32, #tpu.memory_space<any>>) target(%1 : memref<2x4x16x16xf32, #tpu.memory_space<any>>) target_semaphore(%3 : memref<!tpu.dma_semaphore, #tpu.memory_space<semaphore_mem>>)
    %c0_i32_8 = arith.constant 0 : i32
    %c0_i32_9 = arith.constant 0 : i32
    %c0_i32_10 = arith.constant 0 : i32
    %c0_i32_11 = arith.constant 0 : i32
    %c0_i32_12 = arith.constant 0 : i32
    %4 = tpu.memref_slice %arg0[%c0_i32_9, %c0_i32_10, %c0_i32_11, %c0_i32_12] : memref<2x4x16x16xf32, #tpu.memory_space<any>> -> memref<2x4x16x16xf32, #tpu.memory_space<any>>
    %c0_i32_13 = arith.constant 0 : i32
    %c0_i32_14 = arith.constant 0 : i32
    %c0_i32_15 = arith.constant 0 : i32
    %c0_i32_16 = arith.constant 0 : i32
    %5 = tpu.memref_slice %arg1[%c0_i32_13, %c0_i32_14, %c0_i32_15, %c0_i32_16] : memref<2x4x16x16xf32, #tpu.memory_space<any>> -> memref<2x4x16x16xf32, #tpu.memory_space<any>>
    %6 = tpu.memref_slice %arg2[%c0_i32_8] : memref<2x!tpu.dma_semaphore, #tpu.memory_space<semaphore_mem>> -> memref<1x!tpu.dma_semaphore, #tpu.memory_space<semaphore_mem>>
    %7 = tpu.memref_squeeze %6 : memref<1x!tpu.dma_semaphore, #tpu.memory_space<semaphore_mem>> -> memref<!tpu.dma_semaphore, #tpu.memory_space<semaphore_mem>>
    tpu.wait_dma2 semaphore(%7 : memref<!tpu.dma_semaphore, #tpu.memory_space<semaphore_mem>>) src(%4 : memref<2x4x16x16xf32, #tpu.memory_space<any>>) dst(%5 : memref<2x4x16x16xf32, #tpu.memory_space<any>>)
    return
  }
}

</mosaic_0001>

<llo_original>
// kernel: tpu_custom_call.1
$region0: #{tpu_custom_call.1}
  #allocation0 [shape = 'u32[]', space=smem, size = 0x4, offset = 0x4, fixed_abs, tag = 'smem constant byte address 0x4 - core index']
  #allocation1 [shape = 'u32[144,128]{1,0:T(1,128)}', space=vmem, size = 0x12000, scoped, tag = 'internal scratch']
  #allocation2 [shape = 's32[2]{0}', space=sflag, size = 0x8, scoped, tag = 'scratch operand']
  #allocation3 [shape = 's32[]', space=sflag, size = 0x4, offset = 0, fixed_abs, tag = 'sflag constant byte address 0x0 - dummy sync flag']
  #allocation4 [shape = 'u32[0]{0}', space=smem, size = 0, offset = 0, fixed_abs, tag = 'smem constant byte address 0x0 - null']
  %s0 = inlined_call_operand.hbm [shape: f32[2,4,16,16], index: 0, kind: input, shape index: {}]
  %s1 = inlined_call_operand.hbm [shape: f32[2,4,16,16], index: 1, kind: output, shape index: {}]
  %s2 = sld [smem:[#allocation0]]
  $region2: #{tpu_custom_call.1} parent=0
    _
  %s4 = ssub.s32 1, %s2
  %s5 = scalar_select 0, %s4, %s2
  %s7 = sshll.u32 1, 14
  %s8 = sxor.u32 4294967295, %s7
  %12 = dma.general %s0, 2048, %s1, [#allocation2], 131072, [#allocation4], 0, 0
  %s13 = smul.u32 2, 4
  %s14 = smul.u32 %s13, 16
  %s15 = smul.u32 %s14, 1
  %s16 = sshll.u32 %s15, 4
  %17 = dma.done [#allocation2], %s16
  %18 = vsyncmov [#allocation2]
  %s19 = vpop.sfrf %18
  %p20 = scmp.eq.s32.totalorder %s19, 0
  %p21 = pneg %p20
  %23 = shalt.err (%p21)
  %s24 = scalar_lea.sflag [#allocation2], 1
  %25 = vsyncmov %s24
  %s26 = vpop.sfrf %25
  %p27 = scmp.eq.s32.totalorder %s26, 0
  %p28 = pneg %p27
  %30 = shalt.err (%p28)

</llo_original>
